<compile_context>
chip_gen: v7x
topology: tpu7x:2x2x1
jax: 0.10.0
libtpu: 0.0.40
codegen_flags: <defaults>
</compile_context>

<pallas_src>
import functools
import math

import jax
import jax.numpy as jnp
from jax.experimental import pallas as pl
from jax.experimental.pallas import tpu as pltpu


# ---------------------------------------------------------------------------
# Kernel 1: linear_pos projection of the relative position embeddings.
#   rel2d: (L*L, D) @ w_pos: (D, D) -> (L*L, D).  Single grid step, lane
#   width D (not Dh).  Batch independent, so it runs exactly once.
#   TODO(synk): for very long L, tile the (L*L) row axis with a 1-D grid.
# ---------------------------------------------------------------------------
def _pos_proj_kernel(rel_ref, wpos_ref, out_ref):
    out_ref[...] = jnp.dot(rel_ref[...], wpos_ref[...],
                           preferred_element_type=jnp.float32).astype(out_ref.dtype)


# ---------------------------------------------------------------------------
# Kernel 2: fused attention for one batch element (all heads in-kernel).
#   pos_ref block: (H, L, Dh, L) laid out [h, query i, d, key j] -> keys on
#   the lane axis; constant index_map -> fetched from HBM once.
# ---------------------------------------------------------------------------
def _attn_kernel(x_ref, pos_ref, mask_ref, wqkv_ref, bqkv_ref, wo_ref, bo_ref,
                 pbu_ref, pbv_ref, out_ref, *, num_heads, head_size):
    H, Dh = num_heads, head_size
    D = H * Dh
    inv_scale = 1.0 / math.sqrt(Dh)

    x = x_ref[0]                                                       # (L, D)

    # Fused Q/K/V projection: one lane-dense (L, D) @ (D, 3D) MXU pass.
    qkv = (jnp.dot(x, wqkv_ref[...], preferred_element_type=jnp.float32)
           + bqkv_ref[...])                                            # (L, 3D)
    q = qkv[:, 0 * D:1 * D]
    k = qkv[:, 1 * D:2 * D]
    v = qkv[:, 2 * D:3 * D]

    q_u = q + pbu_ref[...]                                             # (L, D)  [i, h*Dh+d]
    q_vt = (q + pbv_ref[...]).T                                        # (D, L)  [h*Dh+d, j]

    mask_row = mask_ref[0]                                             # (1, L): 1 = keep, 0 = mask
    neg_fill = jnp.finfo(jnp.float32).min

    ctx = []
    for h in range(H):                                                 # static loop, H small
        cs = slice(h * Dh, (h + 1) * Dh)
        # Content term: ac[i, j] = (q[i] + u) . k[j]
        ac = jnp.dot(q_u[:, cs], k[:, cs].T,
                     preferred_element_type=jnp.float32)               # (L, L)
        # Relative-position term: bd[i, j] = sum_d pos[h, i, d, j] * (q[j] + v_bias)[d]
        # Lane-dense multiply over keys j, sublane reduce over Dh.
        bd = jnp.sum(pos_ref[h] * q_vt[cs][None, :, :], axis=1)        # (L, L)

        scores = (ac + bd) * inv_scale
        scores = jnp.where(mask_row == 0.0, neg_fill, scores)          # matches torch masked_fill

        m = jnp.max(scores, axis=-1, keepdims=True)
        e = jnp.exp(scores - m)
        denom = jnp.sum(e, axis=-1, keepdims=True)
        # TODO(synk): pl.reciprocal(..., approx=True) (EUP slot) once the looser
        # accuracy is validated against the module tolerance; exact here.
        probs = e * pl.reciprocal(denom, approx=False)
        # TODO(synk): nn.Dropout(p=0.1) on probs is identity at inference; not applied.
        ctx.append(jnp.dot(probs, v[:, cs],
                           preferred_element_type=jnp.float32))        # (L, Dh)

    ctx = jnp.concatenate(ctx, axis=-1)                                # (L, D)
    out = jnp.dot(ctx, wo_ref[...], preferred_element_type=jnp.float32) + bo_ref[...]
    out_ref[0] = out.astype(out_ref.dtype)


def mhsa_relative_position(hidden_states, relative_position_embeddings,
                           attention_mask, params, num_heads):
    """hidden_states: (B, L, D); relative_position_embeddings: (L, L, D);
    attention_mask: (B, L) or None. Weights stored in (in, out) convention."""
    f32 = jnp.float32
    B, L, D = hidden_states.shape
    H = num_heads
    Dh = D // H
    LL = L * L

    # ---- linear_pos on the (L, L, D) relative embeddings (batch independent) ----
    rel2d = relative_position_embeddings.reshape(LL, D).astype(f32)
    proj2d = pl.pallas_call(
        _pos_proj_kernel,
        out_shape=jax.ShapeDtypeStruct((LL, D), f32),
    )(rel2d, params["w_pos"].astype(f32))
    # Layout plumbing (done once, batch independent): (LL, D) -> (H, L, Dh, L)
    # so the kernel's bd multiply is lane-dense over keys.
    proj_t = jnp.transpose(proj2d.reshape(L, L, H, Dh), (2, 0, 3, 1))  # [h, i, d, j]

    # ---- attention mask as (B, 1, L) float: 1 = keep, 0 = mask ----
    if attention_mask is None:
        mask = jnp.ones((B, 1, L), f32)
    else:
        mask = attention_mask.reshape(B, 1, L).astype(f32)

    # ---- pack weights (full matrices; per-head slicing happens in-register) ----
    w_qkv = jnp.concatenate([params["w_q"], params["w_k"], params["w_v"]],
                            axis=1).astype(f32)                         # (D, 3D)
    b_qkv = jnp.concatenate([params["b_q"], params["b_k"], params["b_v"]]
                            ).reshape(1, 3 * D).astype(f32)             # (1, 3D)
    w_out = params["w_out"].astype(f32)                                 # (D, D)
    b_out = params["b_out"].reshape(1, D).astype(f32)                   # (1, D)
    pbu = params["pos_bias_u"].reshape(1, D).astype(f32)                # (1, D) = flat (H, Dh)
    pbv = params["pos_bias_v"].reshape(1, D).astype(f32)

    const2 = lambda b: (0, 0)
    kernel = functools.partial(_attn_kernel, num_heads=H, head_size=Dh)
    # NOTE: default scoped VMEM is ample at these shapes; for large L re-derive
    # the pos block tiling against v7x's 64 MiB VMEM and raise vmem_limit_bytes.
    out = pl.pallas_call(
        kernel,
        out_shape=jax.ShapeDtypeStruct((B, L, D), f32),
        grid_spec=pltpu.PrefetchScalarGridSpec(
            num_scalar_prefetch=0,
            grid=(B,),                                   # batch only; heads in-kernel
            in_specs=[
                pl.BlockSpec((1, L, D), lambda b: (b, 0, 0)),            # x
                pl.BlockSpec((H, L, Dh, L), lambda b: (0, 0, 0, 0)),     # proj_t (fetched once)
                pl.BlockSpec((1, 1, L), lambda b: (b, 0, 0)),            # mask
                pl.BlockSpec((D, 3 * D), const2),                        # w_qkv
                pl.BlockSpec((1, 3 * D), const2),                        # b_qkv
                pl.BlockSpec((D, D), const2),                            # w_out
                pl.BlockSpec((1, D), const2),                            # b_out
                pl.BlockSpec((1, D), const2),                            # pos_bias_u (flat)
                pl.BlockSpec((1, D), const2),                            # pos_bias_v (flat)
            ],
            out_specs=pl.BlockSpec((1, L, D), lambda b: (b, 0, 0))),
        compiler_params=pltpu.CompilerParams(
            dimension_semantics=("parallel",)),          # 2-way across v7x's 2 TCs
    )(hidden_states.astype(f32), proj_t, mask, w_qkv, b_qkv, w_out, b_out, pbu, pbv)
    return out


# ---------------------------------------------------------------------------
# Pure-JAX reference (faithful port of the PyTorch forward).
# ---------------------------------------------------------------------------
def _reference(x, rel, mask, p, num_heads):
    B, L, D = x.shape
    H = num_heads
    Dh = D // H
    hp = jax.lax.Precision.HIGHEST

    def linear(t, w, b=None):
        y = jnp.einsum("...i,io->...o", t, w, precision=hp)
        return y if b is None else y + b

    q = linear(x, p["w_q"], p["b_q"]).reshape(B, L, H, Dh).transpose(0, 2, 1, 3)
    k = linear(x, p["w_k"], p["b_k"]).reshape(B, L, H, Dh).transpose(0, 2, 1, 3)
    v = linear(x, p["w_v"], p["b_v"]).reshape(B, L, H, Dh).transpose(0, 2, 1, 3)

    proj = linear(rel, p["w_pos"]).reshape(L, L, H, Dh)
    proj = jnp.transpose(proj, (2, 0, 1, 3))                 # (H, L, L, Dh)

    q_t = q.transpose(0, 2, 1, 3)                            # (B, L, H, Dh)
    q_u = (q_t + p["pos_bias_u"]).transpose(0, 2, 1, 3)      # (B, H, L, Dh)
    q_v = (q_t + p["pos_bias_v"]).transpose(0, 2, 1, 3)      # (B, H, L, Dh)

    ac = jnp.einsum("bhid,bhjd->bhij", q_u, k, precision=hp)
    bd = jnp.einsum("bhjd,hijd->bhij", q_v, proj, precision=hp)
    scores = (ac + bd) / math.sqrt(Dh)
    if mask is not None:
        scores = jnp.where(mask[:, None, None, :] == 0,
                           jnp.finfo(scores.dtype).min, scores)
    probs = jax.nn.softmax(scores, axis=-1)
    ctx = jnp.einsum("bhij,bhjd->bhid", probs, v, precision=hp)
    ctx = ctx.transpose(0, 2, 1, 3).reshape(B, L, D)
    return linear(ctx, p["w_out"], p["b_out"])


if __name__ == "__main__":
    # Config: hidden_size=32, num_attention_heads=4; inputs batch=2, seq=8.
    B, L, D, NUM_HEADS = 2, 8, 32, 4
    Dh = D // NUM_HEADS

    key = jax.random.PRNGKey(0)
    ks = jax.random.split(key, 14)
    ws = 1.0 / math.sqrt(D)

    params = {
        "w_q": jax.random.normal(ks[0], (D, D), jnp.float32) * ws,
        "b_q": jax.random.normal(ks[1], (D,), jnp.float32) * 0.1,
        "w_k": jax.random.normal(ks[2], (D, D), jnp.float32) * ws,
        "b_k": jax.random.normal(ks[3], (D,), jnp.float32) * 0.1,
        "w_v": jax.random.normal(ks[4], (D, D), jnp.float32) * ws,
        "b_v": jax.random.normal(ks[5], (D,), jnp.float32) * 0.1,
        "w_out": jax.random.normal(ks[6], (D, D), jnp.float32) * ws,
        "b_out": jax.random.normal(ks[7], (D,), jnp.float32) * 0.1,
        "w_pos": jax.random.normal(ks[8], (D, D), jnp.float32) * ws,
        "pos_bias_u": jax.random.normal(ks[9], (NUM_HEADS, Dh), jnp.float32) * 0.1,
        "pos_bias_v": jax.random.normal(ks[10], (NUM_HEADS, Dh), jnp.float32) * 0.1,
    }
    hidden_states = jax.random.normal(ks[11], (B, L, D), jnp.float32)
    position_embeddings = jax.random.normal(ks[12], (L, L, D), jnp.float32)
    attention_mask = jnp.array([[1, 1, 1, 1, 1, 1, 1, 1],
                                [1, 1, 1, 1, 1, 1, 0, 0]], dtype=jnp.int32)

    out = mhsa_relative_position(hidden_states, position_embeddings,
                                 attention_mask, params, NUM_HEADS)
    out = jax.block_until_ready(out)

    ref = _reference(hidden_states, position_embeddings, attention_mask,
                     params, NUM_HEADS)
    assert out.shape == (B, L, D)
    assert jnp.allclose(out, ref, atol=1e-3, rtol=1e-3), \
        "Pallas output does not match reference"

    print("KERNEL_OK")
</pallas_src>

<mosaic_0001>
module attributes {stable_mosaic.version = 11 : i64} {
  func.func @_pos_proj_kernel(%arg0: memref<64x32xf32, #tpu.memory_space<vmem>>, %arg1: memref<32x32xf32, #tpu.memory_space<vmem>>, %arg2: memref<64x32xf32, #tpu.memory_space<vmem>>) attributes {dimension_semantics = [], scalar_prefetch = 0 : i64, scratch_operands = 0 : i64, tpu.core_type = #tpu.core_type<tc>} {
    %c0 = arith.constant 0 : index
    %c0_0 = arith.constant 0 : index
    %0 = vector.load %arg0[%c0, %c0_0] : memref<64x32xf32, #tpu.memory_space<vmem>>, vector<64x32xf32>
    %c0_1 = arith.constant 0 : index
    %c0_2 = arith.constant 0 : index
    %1 = vector.load %arg1[%c0_1, %c0_2] : memref<32x32xf32, #tpu.memory_space<vmem>>, vector<32x32xf32>
    %cst = arith.constant dense<0.000000e+00> : vector<64x32xf32>
    %2 = tpu.matmul %0, %1, %cst {dimension_numbers = #tpu.dot_dimension_numbers<[1], [0], [0], [1], [0, 0, 1, 1], [], []>} : vector<64x32xf32>, vector<32x32xf32>, vector<64x32xf32> -> vector<64x32xf32>
    %c0_3 = arith.constant 0 : index
    %c0_4 = arith.constant 0 : index
    %3 = vector.load %arg2[%c0_3, %c0_4] : memref<64x32xf32, #tpu.memory_space<vmem>>, vector<64x32xf32>
    tpu.vector_store %arg2[%c0_3, %c0_4], %2 {strides = array<i32>} : memref<64x32xf32, #tpu.memory_space<vmem>>, vector<64x32xf32>,
    return
  }
}

</mosaic_0001>

<llo_original>
// kernel: tpu_custom_call.1
$region0: #{tpu_custom_call.1}
  #allocation0 [shape = 'u32[]', space=smem, size = 0x4, offset = 0x4, fixed_abs, tag = 'smem constant byte address 0x4 - core index']
  #allocation1 [shape = 'u32[144,128]{1,0:T(1,128)}', space=vmem, size = 0x12000, scoped, tag = 'internal scratch']
  %s0 = inlined_call_operand.vmem [shape: f32[64,32], index: 0, kind: input, shape index: {}]
  %s1 = inlined_call_operand.vmem [shape: f32[32,32], index: 1, kind: input, shape index: {}]
  %s2 = inlined_call_operand.vmem [shape: f32[64,32], index: 2, kind: output, shape index: {}]
  %s3 = sld [smem:[#allocation0]]
  $region18: #{tpu_custom_call.1} parent=0
    _
  %s5 = ssub.s32 1, %s3
  %s6 = scalar_select 0, %s5, %s3
  // Predicated region
  $region2: #{tpu_custom_call.1} parent=0 // pred_check
    _
  $region3: #{tpu_custom_call.1} parent=0 // pred_check_branch
    %8 = sbr.rel (0) target = $region5
  $region4: #{tpu_custom_call.1} parent=0 // pred_region
    _
  $region5: #{tpu_custom_call.1} parent=0 // pred_fallthru
    _
  // Predicated region
  $region6: #{tpu_custom_call.1} parent=0 // pred_check
    _
  $region7: #{tpu_custom_call.1} parent=0 // pred_check_branch
    %10 = sbr.rel (0) target = $region9
  $region8: #{tpu_custom_call.1} parent=0 // pred_region
    _
  $region9: #{tpu_custom_call.1} parent=0 // pred_fallthru
    _
  %v11 = vld [vmem:[%s0] sm:$0xff]
  %v12 = vld [vmem:[%s0 + $0x8] sm:$0xff]
  %v13 = vld [vmem:[%s0 + $0x10] sm:$0xff]
  %v14 = vld [vmem:[%s0 + $0x18] sm:$0xff]
  %v15 = vld [vmem:[%s0 + $0x20] sm:$0xff]
  %v16 = vld [vmem:[%s0 + $0x28] sm:$0xff]
  %v17 = vld [vmem:[%s0 + $0x30] sm:$0xff]
  %v18 = vld [vmem:[%s0 + $0x38] sm:$0xff]
  %v19 = vld [vmem:[%s1] sm:$0xff]
  %v20 = vld [vmem:[%s1 + $0x8] sm:$0xff]
  %v21 = vld [vmem:[%s1 + $0x10] sm:$0xff]
  %v22 = vld [vmem:[%s1 + $0x18] sm:$0xff]
  %vm23 = vcmask 261120
  %v25 = vsel %vm23, %v11, 0
  %v28 = vsel %vm23, %v12, 0
  %v31 = vsel %vm23, %v13, 0
  %v34 = vsel %vm23, %v14, 0
  %v37 = vsel %vm23, %v15, 0
  %v40 = vsel %vm23, %v16, 0
  %v43 = vsel %vm23, %v17, 0
  %v46 = vsel %vm23, %v18, 0
  %48 = vmatprep.subr.mxu0 0.0
  %49 = vmatpush1.msra.mxu0 %v19
  %50 = vmatprep.subr.mxu0 0.0
  %51 = vmatpush1.msra.mxu0 %v20
  %52 = vmatprep.subr.mxu0 0.0
  %53 = vmatpush1.msra.mxu0 %v21
  %54 = vmatprep.subr.mxu0 0.0
  %55 = vmatpush1.msra.mxu0 %v22
  %56 = vmatprep.subr.mxu0 0.0
  %57 = vmatpush1.msra.mxu0 0.0
  %58 = vmatprep.subr.mxu0 0.0
  %59 = vmatpush1.msra.mxu0 0.0
  %60 = vmatprep.subr.mxu0 0.0
  %61 = vmatpush1.msra.mxu0 0.0
  %62 = vmatprep.subr.mxu0 0.0
  %63 = vmatpush1.msra.mxu0 0.0
  %64 = vmatprep.subr.mxu0 0.0
  %65 = vmatpush1.msra.mxu0 0.0
  %66 = vmatprep.subr.mxu0 0.0
  %67 = vmatpush1.msra.mxu0 0.0
  %68 = vmatprep.subr.mxu0 0.0
  %69 = vmatpush1.msra.mxu0 0.0
  %70 = vmatprep.subr.mxu0 0.0
  %71 = vmatpush1.msra.mxu0 0.0
  %72 = vmatprep.subr.mxu0 0.0
  %73 = vmatpush1.msra.mxu0 0.0
  %74 = vmatprep.subr.mxu0 0.0
  %75 = vmatpush1.msra.mxu0 0.0
  %76 = vmatprep.subr.mxu0 0.0
  %77 = vmatpush1.msra.mxu0 0.0
  %78 = vmatprep.subr.mxu0 0.0
  %79 = vmatpush1.msra.mxu0 0.0
  %80 = vmatprep.subr.mxu0 0.0
  %81 = vmatpush1.msra.mxu0 0.0
  %82 = vmatprep.subr.mxu0 0.0
  %83 = vmatpush1.msra.mxu0 0.0
  %84 = vmatprep.subr.mxu0 0.0
  %85 = vmatpush1.msra.mxu0 0.0
  %86 = vmatprep.subr.mxu0 0.0
  %87 = vmatpush1.msra.mxu0 0.0
  %88 = vmatprep.subr.mxu0 0.0
  %89 = vmatpush1.msra.mxu0 0.0
  %90 = vmatprep.subr.mxu0 0.0
  %91 = vmatpush1.msra.mxu0 0.0
  %92 = vmatprep.subr.mxu0 0.0
  %93 = vmatpush1.msra.mxu0 0.0
  %94 = vmatprep.subr.mxu0 0.0
  %95 = vmatpush1.msra.mxu0 0.0
  %96 = vmatprep.subr.mxu0 0.0
  %97 = vmatpush1.msra.mxu0 0.0
  %98 = vmatprep.subr.mxu0 0.0
  %99 = vmatpush1.msra.mxu0 0.0
  %100 = vmatprep.subr.mxu0 0.0
  %101 = vmatpush1.msra.mxu0 0.0
  %102 = vmatprep.subr.mxu0 0.0
  %103 = vmatpush1.msra.mxu0 0.0
  %104 = vmatprep.subr.mxu0 0.0
  %105 = vmatpush1.msra.mxu0 0.0
  %106 = vmatprep.subr.mxu0 0.0
  %107 = vmatpush1.msra.mxu0 0.0
  %108 = vmatprep.subr.mxu0 0.0
  %109 = vmatpush1.msra.mxu0 0.0
  %110 = vmatprep.subr.mxu0 0.0
  %111 = vmatpush1.msra.mxu0 0.0
  %112 = vmatprep.mubr.f32.mxu0 0.0
  %113 = vmatmul.mubr.f32.gmra.mrb[0].mxu0 %v25
  %v114 = vpop.f32.mrb[0].mxu0
  %v115 = vadd.f32 0.0, %v114
  %v116 = vpop.f32.mrb[0].mxu0
  %117 = vmatprep.mubr.f32.mxu0 0.0
  %118 = vmatmul.mubr.f32.gmra.mrb[0].mxu0 %v28
  %v119 = vpop.f32.mrb[0].mxu0
  %v120 = vadd.f32 0.0, %v119
  %v121 = vpop.f32.mrb[0].mxu0
  %122 = vmatprep.mubr.f32.mxu0 0.0
  %123 = vmatmul.mubr.f32.gmra.mrb[0].mxu0 %v31
  %v124 = vpop.f32.mrb[0].mxu0
  %v125 = vadd.f32 0.0, %v124
  %v126 = vpop.f32.mrb[0].mxu0
  %127 = vmatprep.mubr.f32.mxu0 0.0
  %128 = vmatmul.mubr.f32.gmra.mrb[0].mxu0 %v34
  %v129 = vpop.f32.mrb[0].mxu0
  %v130 = vadd.f32 0.0, %v129
  %v131 = vpop.f32.mrb[0].mxu0
  %132 = vmatprep.mubr.f32.mxu0 0.0
  %133 = vmatmul.mubr.f32.gmra.mrb[0].mxu0 %v37
  %v134 = vpop.f32.mrb[0].mxu0
  %v135 = vadd.f32 0.0, %v134
  %v136 = vpop.f32.mrb[0].mxu0
  %137 = vmatprep.mubr.f32.mxu0 0.0
  %138 = vmatmul.mubr.f32.gmra.mrb[0].mxu0 %v40
  %v139 = vpop.f32.mrb[0].mxu0
  %v140 = vadd.f32 0.0, %v139
  %v141 = vpop.f32.mrb[0].mxu0
  %142 = vmatprep.mubr.f32.mxu0 0.0
  %143 = vmatmul.mubr.f32.gmra.mrb[0].mxu0 %v43
  %v144 = vpop.f32.mrb[0].mxu0
  %v145 = vadd.f32 0.0, %v144
  %v146 = vpop.f32.mrb[0].mxu0
  %147 = vmatprep.mubr.f32.mxu0 0.0
  %148 = vmatmul.mubr.f32.gmra.mrb[0].mxu0 %v46
  %v149 = vpop.f32.mrb[0].mxu0
  %v150 = vadd.f32 0.0, %v149
  %v151 = vpop.f32.mrb[0].mxu0
  %152 = vdwg.mxu0
  %153 = vst.msk [vmem:[%s2] sm:$0xff] %vm23, %v115
  %154 = vst.msk [vmem:[%s2 + $0x8] sm:$0xff] %vm23, %v120
  %155 = vst.msk [vmem:[%s2 + $0x10] sm:$0xff] %vm23, %v125
  %156 = vst.msk [vmem:[%s2 + $0x18] sm:$0xff] %vm23, %v130
  %157 = vst.msk [vmem:[%s2 + $0x20] sm:$0xff] %vm23, %v135
  %158 = vst.msk [vmem:[%s2 + $0x28] sm:$0xff] %vm23, %v140
  %159 = vst.msk [vmem:[%s2 + $0x30] sm:$0xff] %vm23, %v145
  %160 = vst.msk [vmem:[%s2 + $0x38] sm:$0xff] %vm23, %v150
  // Predicated region
  $region10: #{tpu_custom_call.1} parent=0 // pred_check
    _
  $region11: #{tpu_custom_call.1} parent=0 // pred_check_branch
    %162 = sbr.rel (0) target = $region13
  $region12: #{tpu_custom_call.1} parent=0 // pred_region
    _
  $region13: #{tpu_custom_call.1} parent=0 // pred_fallthru
    _
  // Predicated region
  $region14: #{tpu_custom_call.1} parent=0 // pred_check
    _
  $region15: #{tpu_custom_call.1} parent=0 // pred_check_branch
    %164 = sbr.rel (0) target = $region17
  $region16: #{tpu_custom_call.1} parent=0 // pred_region
    _
  $region17: #{tpu_custom_call.1} parent=0 // pred_fallthru
    _

</llo_original>
